<compile_context>
chip_gen: v5e
topology: v5e:2x2
jax: 0.10.0
libtpu: 0.0.40
codegen_flags: <defaults>
</compile_context>

<pallas_src>
import jax
import jax.numpy as jnp
import numpy as np
from jax.experimental import pallas as pl
from jax.experimental.pallas import tpu as pltpu

HDIM = 512        # resnet18 backbone feature dim
H1 = 64
H2 = 10
OUT = 1
H2_PAD = 128      # lane-pad only the tiny middle/final layers (zero pad -> exact)
DEFAULT_TILE_B = 1024


def mlp_head_kernel(x_ref, w1_ref, b1_ref, w2_ref, b2_ref, w3_ref, b3_ref, o_ref):
    # One batch tile per grid step; all weights stay VMEM-resident (constant
    # block index across the grid).
    x = x_ref[...]                                                     # (tb, 512)
    h = jnp.dot(x, w1_ref[...], preferred_element_type=jnp.float32) + b1_ref[...]
    h = jnp.maximum(h, 0.0)                                            # (tb, 64)
    h = jnp.dot(h, w2_ref[...], preferred_element_type=jnp.float32) + b2_ref[...]
    h = jnp.maximum(h, 0.0)                                            # (tb, 128)
    # Linear(10, 1) as a weighted lane-reduction (w3 stored as a zero-padded row);
    # avoids an N=1 matmul and keeps the output lane-width at exactly OUT=1.
    o_ref[...] = jnp.sum(h * w3_ref[...], axis=-1, keepdims=True) + b3_ref[...]


def _round_up(n, m):
    return ((n + m - 1) // m) * m


def init_params(key):
    """Deterministic kaiming_normal_(mode='fan_out')-style init, biases = 0."""
    k1, k2, k3 = jax.random.split(key, 3)
    # PyTorch Linear weight is (out, in); we store (in, out) so the kernel does x @ W.
    w1 = jax.random.normal(k1, (HDIM, H1), jnp.float32) * np.sqrt(2.0 / H1)
    w2 = jax.random.normal(k2, (H1, H2), jnp.float32) * np.sqrt(2.0 / H2)
    w3 = jax.random.normal(k3, (H2, OUT), jnp.float32) * np.sqrt(2.0 / OUT)
    b1 = jnp.zeros((H1,), jnp.float32)
    b2 = jnp.zeros((H2,), jnp.float32)
    b3 = jnp.zeros((OUT,), jnp.float32)
    return (w1, b1, w2, b2, w3, b3)


def prep_params(params):
    """One-time kernel-layout packing (call OUTSIDE the hot path).

    W1 stays unpadded (512, 64); W2/b2 are lane-padded to 128 and W3 becomes a
    zero-padded (1, 128) row for the final multiply-reduce.  Zero padding is
    exact through matmul + ReLU + reduction.
    """
    w1, b1, w2, b2, w3, b3 = params
    w2p = jnp.zeros((H1, H2_PAD), jnp.float32).at[:, :H2].set(w2)
    b2p = jnp.zeros((1, H2_PAD), jnp.float32).at[:, :H2].set(b2)
    w3p = jnp.zeros((1, H2_PAD), jnp.float32).at[:, :H2].set(w3[:, 0])
    return (w1, b1[None, :], w2p, b2p, w3p, b3.reshape(1, 1))


def _choose_tile_b(batch, tile_b):
    # Multiple of 8 sublanes; capped so the "parallel" batch grid has >= 4 steps
    # when the batch allows it (keeps both v7x TensorCores busy + pipelined).
    tb = min(tile_b, _round_up(pl.cdiv(batch, 4), 8), _round_up(batch, 8))
    return max(8, _round_up(tb, 8))


def neural_network_head(x, packed_params, *, tile_b=DEFAULT_TILE_B):
    """Pallas implementation of self.linear_relu_stack(x); x: (B, HDIM) f32.

    `packed_params` must come from prep_params() (pre-packed, device-resident).
    """
    w1, b1, w2p, b2p, w3p, b3 = packed_params
    B = x.shape[0]

    tb = _choose_tile_b(B, tile_b)
    grid = (pl.cdiv(B, tb),)   # no wrapper-side padding of x; edge block is masked

    return pl.pallas_call(
        mlp_head_kernel,
        out_shape=jax.ShapeDtypeStruct((B, OUT), jnp.float32),
        grid=grid,
        in_specs=[
            pl.BlockSpec((tb, HDIM), lambda i: (i, 0)),     # x: streamed per tile
            pl.BlockSpec((HDIM, H1), lambda i: (0, 0)),     # W1: VMEM-resident, unpadded
            pl.BlockSpec((1, H1), lambda i: (0, 0)),        # b1
            pl.BlockSpec((H1, H2_PAD), lambda i: (0, 0)),   # W2 (lane-padded)
            pl.BlockSpec((1, H2_PAD), lambda i: (0, 0)),    # b2
            pl.BlockSpec((1, H2_PAD), lambda i: (0, 0)),    # w3 row (lane-padded)
            pl.BlockSpec((1, OUT), lambda i: (0, 0)),       # b3
        ],
        out_specs=pl.BlockSpec((tb, OUT), lambda i: (i, 0)),   # narrow (B, 1) output
        compiler_params=pltpu.CompilerParams(
            dimension_semantics=("parallel",),   # megacore-shard the batch grid
        ),
    )(x, w1, b1, w2p, b2p, w3p, b3)


def reference_head(x, params):
    w1, b1, w2, b2, w3, b3 = params
    h = jnp.maximum(x @ w1 + b1, 0.0)
    h = jnp.maximum(h @ w2 + b2, 0.0)
    return h @ w3 + b3


if __name__ == "__main__":
    key = jax.random.PRNGKey(0)
    kx1, kx2, kx3, kp = jax.random.split(key, 4)

    params = init_params(kp)
    packed = prep_params(params)   # one-time layout packing, outside the hot path

    # Case 1: small batch, single grid step.
    B1 = 8
    x1 = jax.random.normal(kx1, (B1, HDIM), jnp.float32)   # backbone features
    y1 = jax.block_until_ready(neural_network_head(x1, packed))
    assert y1.shape == (B1, OUT)
    np.testing.assert_allclose(np.asarray(y1), np.asarray(reference_head(x1, params)),
                               rtol=1e-4, atol=1e-4)

    # Case 2: batch not a multiple of 8 -> masked edge block (no wrapper pad).
    B2 = 13
    x2 = jax.random.normal(kx2, (B2, HDIM), jnp.float32)
    y2 = jax.block_until_ready(neural_network_head(x2, packed))
    assert y2.shape == (B2, OUT)
    np.testing.assert_allclose(np.asarray(y2), np.asarray(reference_head(x2, params)),
                               rtol=1e-4, atol=1e-4)

    # Case 3: multi-step grid with a caller-supplied non-multiple-of-8 tile_b
    # (rounded internally) and a non-divisible final block.
    B3 = 40
    x3 = jax.random.normal(kx3, (B3, HDIM), jnp.float32)
    y3 = jax.block_until_ready(neural_network_head(x3, packed, tile_b=20))
    assert y3.shape == (B3, OUT)
    np.testing.assert_allclose(np.asarray(y3), np.asarray(reference_head(x3, params)),
                               rtol=1e-4, atol=1e-4)

    print("KERNEL_OK")
</pallas_src>

<mosaic_0001>
module attributes {stable_mosaic.version = 11 : i64} {
  func.func @mlp_head_kernel(%arg0: i32, %arg1: memref<8x512xf32, #tpu.memory_space<vmem>>, %arg2: memref<512x64xf32, #tpu.memory_space<vmem>>, %arg3: memref<1x64xf32, #tpu.memory_space<vmem>>, %arg4: memref<64x128xf32, #tpu.memory_space<vmem>>, %arg5: memref<1x128xf32, #tpu.memory_space<vmem>>, %arg6: memref<1x128xf32, #tpu.memory_space<vmem>>, %arg7: memref<1x1xf32, #tpu.memory_space<vmem>>, %arg8: memref<8x1xf32, #tpu.memory_space<vmem>>) attributes {dimension_semantics = [#tpu.dimension_semantics<parallel>], iteration_bounds = array<i64: 1>, scalar_prefetch = 0 : i64, scratch_operands = 0 : i64, tpu.core_type = #tpu.core_type<tc>, window_params = [{transform_indices = @transform_0, window_bounds = array<i64: 8, 512>}, {pipeline_mode = #tpu.pipeline_mode<synchronous>, transform_indices = @transform_1, window_bounds = array<i64: 512, 64>}, {pipeline_mode = #tpu.pipeline_mode<synchronous>, transform_indices = @transform_2, window_bounds = array<i64: 1, 64>}, {pipeline_mode = #tpu.pipeline_mode<synchronous>, transform_indices = @transform_3, window_bounds = array<i64: 64, 128>}, {pipeline_mode = #tpu.pipeline_mode<synchronous>, transform_indices = @transform_4, window_bounds = array<i64: 1, 128>}, {pipeline_mode = #tpu.pipeline_mode<synchronous>, transform_indices = @transform_5, window_bounds = array<i64: 1, 128>}, {pipeline_mode = #tpu.pipeline_mode<synchronous>, transform_indices = @transform_6, window_bounds = array<i64: 1, 1>}, {transform_indices = @transform_7, window_bounds = array<i64: 8, 1>}]} {
    %c0 = arith.constant 0 : index
    %c0_0 = arith.constant 0 : index
    %0 = vector.load %arg1[%c0, %c0_0] : memref<8x512xf32, #tpu.memory_space<vmem>>, vector<8x512xf32>
    %c0_1 = arith.constant 0 : index
    %c0_2 = arith.constant 0 : index
    %1 = vector.load %arg2[%c0_1, %c0_2] : memref<512x64xf32, #tpu.memory_space<vmem>>, vector<512x64xf32>
    %cst = arith.constant dense<0.000000e+00> : vector<8x64xf32>
    %2 = tpu.matmul %0, %1, %cst {dimension_numbers = #tpu.dot_dimension_numbers<[1], [0], [0], [1], [0, 0, 1, 1], [], []>} : vector<8x512xf32>, vector<512x64xf32>, vector<8x64xf32> -> vector<8x64xf32>
    %c0_3 = arith.constant 0 : index
    %c0_4 = arith.constant 0 : index
    %3 = vector.load %arg3[%c0_3, %c0_4] : memref<1x64xf32, #tpu.memory_space<vmem>>, vector<1x64xf32>
    %4 = vector.broadcast %3 : vector<1x64xf32> to vector<8x64xf32>
    %5 = arith.addf %2, %4 : vector<8x64xf32>
    %cst_5 = arith.constant 0.000000e+00 : f32
    %6 = vector.broadcast %cst_5 : f32 to vector<8x64xf32>
    %7 = arith.maximumf %5, %6 : vector<8x64xf32>
    %c0_6 = arith.constant 0 : index
    %c0_7 = arith.constant 0 : index
    %8 = vector.load %arg4[%c0_6, %c0_7] : memref<64x128xf32, #tpu.memory_space<vmem>>, vector<64x128xf32>
    %cst_8 = arith.constant dense<0.000000e+00> : vector<8x128xf32>
    %9 = tpu.matmul %7, %8, %cst_8 {dimension_numbers = #tpu.dot_dimension_numbers<[1], [0], [0], [1], [0, 0, 1, 1], [], []>} : vector<8x64xf32>, vector<64x128xf32>, vector<8x128xf32> -> vector<8x128xf32>
    %c0_9 = arith.constant 0 : index
    %c0_10 = arith.constant 0 : index
    %10 = vector.load %arg5[%c0_9, %c0_10] : memref<1x128xf32, #tpu.memory_space<vmem>>, vector<1x128xf32>
    %11 = vector.broadcast %10 : vector<1x128xf32> to vector<8x128xf32>
    %12 = arith.addf %9, %11 : vector<8x128xf32>
    %cst_11 = arith.constant 0.000000e+00 : f32
    %13 = vector.broadcast %cst_11 : f32 to vector<8x128xf32>
    %14 = arith.maximumf %12, %13 : vector<8x128xf32>
    %c0_12 = arith.constant 0 : index
    %c0_13 = arith.constant 0 : index
    %15 = vector.load %arg6[%c0_12, %c0_13] : memref<1x128xf32, #tpu.memory_space<vmem>>, vector<1x128xf32>
    %16 = vector.broadcast %15 : vector<1x128xf32> to vector<8x128xf32>
    %17 = arith.mulf %14, %16 : vector<8x128xf32>
    %cst_14 = arith.constant dense<0.000000e+00> : vector<8xf32>
    %18 = vector.multi_reduction <add>, %17, %cst_14 [1] : vector<8x128xf32> to vector<8xf32>
    %19 = vector.shape_cast %18 : vector<8xf32> to vector<8x1xf32>
    %c0_15 = arith.constant 0 : index
    %c0_16 = arith.constant 0 : index
    %20 = vector.load %arg7[%c0_15, %c0_16] : memref<1x1xf32, #tpu.memory_space<vmem>>, vector<1x1xf32>
    %21 = vector.broadcast %20 : vector<1x1xf32> to vector<8x1xf32>
    %22 = arith.addf %19, %21 : vector<8x1xf32>
    %c0_17 = arith.constant 0 : index
    %c0_18 = arith.constant 0 : index
    %23 = vector.load %arg8[%c0_17, %c0_18] : memref<8x1xf32, #tpu.memory_space<vmem>>, vector<8x1xf32>
    tpu.vector_store %arg8[%c0_17, %c0_18], %22 {strides = array<i32>} : memref<8x1xf32, #tpu.memory_space<vmem>>, vector<8x1xf32>,
    return
  }
  func.func @transform_0(%arg0: i32) -> (i32, i32) {
    %c0_i32 = arith.constant 0 : i32
    %c0_i32_0 = arith.constant 0 : i32
    return %arg0, %c0_i32 : i32, i32
  }
  func.func @transform_1(%arg0: i32) -> (i32, i32) {
    %c0_i32 = arith.constant 0 : i32
    %c0_i32_0 = arith.constant 0 : i32
    %c0_i32_1 = arith.constant 0 : i32
    return %c0_i32, %c0_i32_0 : i32, i32
  }
  func.func @transform_2(%arg0: i32) -> (i32, i32) {
    %c0_i32 = arith.constant 0 : i32
    %c0_i32_0 = arith.constant 0 : i32
    %c0_i32_1 = arith.constant 0 : i32
    return %c0_i32, %c0_i32_0 : i32, i32
  }
  func.func @transform_3(%arg0: i32) -> (i32, i32) {
    %c0_i32 = arith.constant 0 : i32
    %c0_i32_0 = arith.constant 0 : i32
    %c0_i32_1 = arith.constant 0 : i32
    return %c0_i32, %c0_i32_0 : i32, i32
  }
  func.func @transform_4(%arg0: i32) -> (i32, i32) {
    %c0_i32 = arith.constant 0 : i32
    %c0_i32_0 = arith.constant 0 : i32
    %c0_i32_1 = arith.constant 0 : i32
    return %c0_i32, %c0_i32_0 : i32, i32
  }
  func.func @transform_5(%arg0: i32) -> (i32, i32) {
    %c0_i32 = arith.constant 0 : i32
    %c0_i32_0 = arith.constant 0 : i32
    %c0_i32_1 = arith.constant 0 : i32
    return %c0_i32, %c0_i32_0 : i32, i32
  }
  func.func @transform_6(%arg0: i32) -> (i32, i32) {
    %c0_i32 = arith.constant 0 : i32
    %c0_i32_0 = arith.constant 0 : i32
    %c0_i32_1 = arith.constant 0 : i32
    return %c0_i32, %c0_i32_0 : i32, i32
  }
  func.func @transform_7(%arg0: i32) -> (i32, i32) {
    %c0_i32 = arith.constant 0 : i32
    %c0_i32_0 = arith.constant 0 : i32
    return %arg0, %c0_i32 : i32, i32
  }
}

</mosaic_0001>

<llo_original>
// kernel: tpu_custom_call.1
$region0: #{tpu_custom_call.1}
  #allocation0 [shape = 'u32[]', space=smem, size = 0x4, offset = 0x4, fixed_abs, tag = 'smem constant byte address 0x4 - core index']
  #allocation1 [shape = 'u32[72,128]{1,0:T(1,128)}', space=vmem, size = 0x9000, scoped, tag = 'internal scratch']
  #allocation2 [shape = 'f32[1,1]{1,0:T(1,128)S(1)}', space=vmem, size = 0x200, scoped, tag = 'scoped memory for tpu_custom_call.1']
  %s0 = inlined_call_operand.vmem [shape: f32[8,512], index: 0, kind: input, shape index: {}]
  %s1 = inlined_call_operand.vmem [shape: f32[512,64], index: 1, kind: input, shape index: {}]
  %s2 = inlined_call_operand.vmem [shape: f32[1,64], index: 2, kind: input, shape index: {}]
  %s3 = inlined_call_operand.vmem [shape: f32[64,128], index: 3, kind: input, shape index: {}]
  %s4 = inlined_call_operand.vmem [shape: f32[1,128], index: 4, kind: input, shape index: {}]
  %s5 = inlined_call_operand.vmem [shape: f32[1,128], index: 5, kind: input, shape index: {}]
  %s6 = inlined_call_operand.<no memory space> [shape: f32[1,1], index: 6, kind: input, shape index: {}]
  %s7 = inlined_call_operand.vmem [shape: f32[8,1], index: 7, kind: output, shape index: {}]
  %s8 = sld [smem:[#allocation0]]
  $region38: #{tpu_custom_call.1} parent=0
    _
  %s10 = ssub.s32 1, %s8
  %s11 = scalar_select 0, %s10, %s8
  %v12 = vstv %s6
  %13 = vst [vmem:[#allocation2] sm:$0x1] %v12
  // Predicated region
  $region2: #{tpu_custom_call.1} parent=0 // pred_check
    _
  $region3: #{tpu_custom_call.1} parent=0 // pred_check_branch
    %15 = sbr.rel (0) target = $region5
  $region4: #{tpu_custom_call.1} parent=0 // pred_region
    _
  $region5: #{tpu_custom_call.1} parent=0 // pred_fallthru
    _
  // Predicated region
  $region6: #{tpu_custom_call.1} parent=0 // pred_check
    _
  $region7: #{tpu_custom_call.1} parent=0 // pred_check_branch
    %17 = sbr.rel (0) target = $region9
  $region8: #{tpu_custom_call.1} parent=0 // pred_region
    _
  $region9: #{tpu_custom_call.1} parent=0 // pred_fallthru
    _
  // Predicated region
  $region10: #{tpu_custom_call.1} parent=0 // pred_check
    _
  $region11: #{tpu_custom_call.1} parent=0 // pred_check_branch
    %19 = sbr.rel (0) target = $region13
  $region12: #{tpu_custom_call.1} parent=0 // pred_region
    _
  $region13: #{tpu_custom_call.1} parent=0 // pred_fallthru
    _
  // Predicated region
  $region14: #{tpu_custom_call.1} parent=0 // pred_check
    _
  $region15: #{tpu_custom_call.1} parent=0 // pred_check_branch
    %21 = sbr.rel (0) target = $region17
  $region16: #{tpu_custom_call.1} parent=0 // pred_region
    _
  $region17: #{tpu_custom_call.1} parent=0 // pred_fallthru
    _
  // Predicated region
  $region18: #{tpu_custom_call.1} parent=0 // pred_check
    _
  $region19: #{tpu_custom_call.1} parent=0 // pred_check_branch
    %23 = sbr.rel (0) target = $region21
  $region20: #{tpu_custom_call.1} parent=0 // pred_region
    _
  $region21: #{tpu_custom_call.1} parent=0 // pred_fallthru
    _
  // Predicated region
  $region22: #{tpu_custom_call.1} parent=0 // pred_check
    _
  $region23: #{tpu_custom_call.1} parent=0 // pred_check_branch
    %25 = sbr.rel (0) target = $region25
  $region24: #{tpu_custom_call.1} parent=0 // pred_region
    _
  $region25: #{tpu_custom_call.1} parent=0 // pred_fallthru
    _
  // Predicated region
  $region26: #{tpu_custom_call.1} parent=0 // pred_check
    _
  $region27: #{tpu_custom_call.1} parent=0 // pred_check_branch
    %27 = sbr.rel (0) target = $region29
  $region28: #{tpu_custom_call.1} parent=0 // pred_region
    _
  $region29: #{tpu_custom_call.1} parent=0 // pred_fallthru
    _
  %v28 = vld [vmem:[%s0] sm:$0xff]
  %v29 = vld [vmem:[%s0 + $0x8] sm:$0xff]
  %v30 = vld [vmem:[%s0 + $0x10] sm:$0xff]
  %v31 = vld [vmem:[%s0 + $0x18] sm:$0xff]
  %v32 = vld [vmem:[%s1] sm:$0xff]
  %v33 = vld [vmem:[%s1 + $0x8] sm:$0xff]
  %v34 = vld [vmem:[%s1 + $0x10] sm:$0xff]
  %v35 = vld [vmem:[%s1 + $0x18] sm:$0xff]
  %v36 = vld [vmem:[%s1 + $0x20] sm:$0xff]
  %v37 = vld [vmem:[%s1 + $0x28] sm:$0xff]
  %v38 = vld [vmem:[%s1 + $0x30] sm:$0xff]
  %v39 = vld [vmem:[%s1 + $0x38] sm:$0xff]
  %v40 = vld [vmem:[%s1 + $0x40] sm:$0xff]
  %v41 = vld [vmem:[%s1 + $0x48] sm:$0xff]
  %v42 = vld [vmem:[%s1 + $0x50] sm:$0xff]
  %v43 = vld [vmem:[%s1 + $0x58] sm:$0xff]
  %v44 = vld [vmem:[%s1 + $0x60] sm:$0xff]
  %v45 = vld [vmem:[%s1 + $0x68] sm:$0xff]
  %v46 = vld [vmem:[%s1 + $0x70] sm:$0xff]
  %v47 = vld [vmem:[%s1 + $0x78] sm:$0xff]
  %v48 = vld [vmem:[%s1 + $0x80] sm:$0xff]
  %v49 = vld [vmem:[%s1 + $0x88] sm:$0xff]
  %v50 = vld [vmem:[%s1 + $0x90] sm:$0xff]
  %v51 = vld [vmem:[%s1 + $0x98] sm:$0xff]
  %v52 = vld [vmem:[%s1 + $0xa0] sm:$0xff]
  %v53 = vld [vmem:[%s1 + $0xa8] sm:$0xff]
  %v54 = vld [vmem:[%s1 + $0xb0] sm:$0xff]
  %v55 = vld [vmem:[%s1 + $0xb8] sm:$0xff]
  %v56 = vld [vmem:[%s1 + $0xc0] sm:$0xff]
  %v57 = vld [vmem:[%s1 + $0xc8] sm:$0xff]
  %v58 = vld [vmem:[%s1 + $0xd0] sm:$0xff]
  %v59 = vld [vmem:[%s1 + $0xd8] sm:$0xff]
  %v60 = vld [vmem:[%s1 + $0xe0] sm:$0xff]
  %v61 = vld [vmem:[%s1 + $0xe8] sm:$0xff]
  %v62 = vld [vmem:[%s1 + $0xf0] sm:$0xff]
  %v63 = vld [vmem:[%s1 + $0xf8] sm:$0xff]
  %v64 = vld [vmem:[%s1 + $0x100] sm:$0xff]
  %v65 = vld [vmem:[%s1 + $0x108] sm:$0xff]
  %v66 = vld [vmem:[%s1 + $0x110] sm:$0xff]
  %v67 = vld [vmem:[%s1 + $0x118] sm:$0xff]
  %v68 = vld [vmem:[%s1 + $0x120] sm:$0xff]
  %v69 = vld [vmem:[%s1 + $0x128] sm:$0xff]
  %v70 = vld [vmem:[%s1 + $0x130] sm:$0xff]
  %v71 = vld [vmem:[%s1 + $0x138] sm:$0xff]
  %v72 = vld [vmem:[%s1 + $0x140] sm:$0xff]
  %v73 = vld [vmem:[%s1 + $0x148] sm:$0xff]
  %v74 = vld [vmem:[%s1 + $0x150] sm:$0xff]
  %v75 = vld [vmem:[%s1 + $0x158] sm:$0xff]
  %v76 = vld [vmem:[%s1 + $0x160] sm:$0xff]
  %v77 = vld [vmem:[%s1 + $0x168] sm:$0xff]
  %v78 = vld [vmem:[%s1 + $0x170] sm:$0xff]
  %v79 = vld [vmem:[%s1 + $0x178] sm:$0xff]
  %v80 = vld [vmem:[%s1 + $0x180] sm:$0xff]
  %v81 = vld [vmem:[%s1 + $0x188] sm:$0xff]
  %v82 = vld [vmem:[%s1 + $0x190] sm:$0xff]
  %v83 = vld [vmem:[%s1 + $0x198] sm:$0xff]
  %v84 = vld [vmem:[%s1 + $0x1a0] sm:$0xff]
  %v85 = vld [vmem:[%s1 + $0x1a8] sm:$0xff]
  %v86 = vld [vmem:[%s1 + $0x1b0] sm:$0xff]
  %v87 = vld [vmem:[%s1 + $0x1b8] sm:$0xff]
  %v88 = vld [vmem:[%s1 + $0x1c0] sm:$0xff]
  %v89 = vld [vmem:[%s1 + $0x1c8] sm:$0xff]
  %v90 = vld [vmem:[%s1 + $0x1d0] sm:$0xff]
  %v91 = vld [vmem:[%s1 + $0x1d8] sm:$0xff]
  %v92 = vld [vmem:[%s1 + $0x1e0] sm:$0xff]
  %v93 = vld [vmem:[%s1 + $0x1e8] sm:$0xff]
  %v94 = vld [vmem:[%s1 + $0x1f0] sm:$0xff]
  %v95 = vld [vmem:[%s1 + $0x1f8] sm:$0xff]
  %v96 = vld [vmem:[%s2] sm:$0x1]
  %v98 = vperm.slane %v96, 0
  %100 = vmatpush.msra.mxu0 %v47
  %101 = vmatpush.msra.mxu0 %v46
  %102 = vmatpush.msra.mxu0 %v45
  %103 = vmatpush.msra.mxu0 %v44
  %104 = vmatpush.msra.mxu0 %v43
  %105 = vmatpush.msra.mxu0 %v42
  %106 = vmatpush.msra.mxu0 %v41
  %107 = vmatpush.msra.mxu0 %v40
  %108 = vmatpush.msra.mxu0 %v39
  %109 = vmatpush.msra.mxu0 %v38
  %110 = vmatpush.msra.mxu0 %v37
  %111 = vmatpush.msra.mxu0 %v36
  %112 = vmatpush.msra.mxu0 %v35
  %113 = vmatpush.msra.mxu0 %v34
  %114 = vmatpush.msra.mxu0 %v33
  %115 = vmatpush.msra.mxu0 %v32
  %116 = vmatmul.f32.gmra.mxu0 %v28
  %v117 = vpop.f32.mrf.mxu0
  %v118 = vadd.f32 %v98, %v117
  %119 = vdwg.mxu0
  %120 = vmatpush.msra.mxu0 %v63
  %121 = vmatpush.msra.mxu0 %v62
  %122 = vmatpush.msra.mxu0 %v61
  %123 = vmatpush.msra.mxu0 %v60
  %124 = vmatpush.msra.mxu0 %v59
  %125 = vmatpush.msra.mxu0 %v58
  %126 = vmatpush.msra.mxu0 %v57
  %127 = vmatpush.msra.mxu0 %v56
  %128 = vmatpush.msra.mxu0 %v55
  %129 = vmatpush.msra.mxu0 %v54
  %130 = vmatpush.msra.mxu0 %v53
  %131 = vmatpush.msra.mxu0 %v52
  %132 = vmatpush.msra.mxu0 %v51
  %133 = vmatpush.msra.mxu0 %v50
  %134 = vmatpush.msra.mxu0 %v49
  %135 = vmatpush.msra.mxu0 %v48
  %136 = vmatmul.f32.gmra.mxu0 %v29
  %v137 = vpop.f32.mrf.mxu0
  %v138 = vadd.f32 %v118, %v137
  %139 = vdwg.mxu0
  %140 = vmatpush.msra.mxu0 %v79
  %141 = vmatpush.msra.mxu0 %v78
  %142 = vmatpush.msra.mxu0 %v77
  %143 = vmatpush.msra.mxu0 %v76
  %144 = vmatpush.msra.mxu0 %v75
  %145 = vmatpush.msra.mxu0 %v74
  %146 = vmatpush.msra.mxu0 %v73
  %147 = vmatpush.msra.mxu0 %v72
  %148 = vmatpush.msra.mxu0 %v71
  %149 = vmatpush.msra.mxu0 %v70
  %150 = vmatpush.msra.mxu0 %v69
  %151 = vmatpush.msra.mxu0 %v68
  %152 = vmatpush.msra.mxu0 %v67
  %153 = vmatpush.msra.mxu0 %v66
  %154 = vmatpush.msra.mxu0 %v65
  %155 = vmatpush.msra.mxu0 %v64
  %156 = vmatmul.f32.gmra.mxu0 %v30
  %v157 = vpop.f32.mrf.mxu0
  %v158 = vadd.f32 %v138, %v157
  %159 = vdwg.mxu0
  %160 = vmatpush.msra.mxu0 %v95
  %161 = vmatpush.msra.mxu0 %v94
  %162 = vmatpush.msra.mxu0 %v93
  %163 = vmatpush.msra.mxu0 %v92
  %164 = vmatpush.msra.mxu0 %v91
  %165 = vmatpush.msra.mxu0 %v90
  %166 = vmatpush.msra.mxu0 %v89
  %167 = vmatpush.msra.mxu0 %v88
  %168 = vmatpush.msra.mxu0 %v87
  %169 = vmatpush.msra.mxu0 %v86
  %170 = vmatpush.msra.mxu0 %v85
  %171 = vmatpush.msra.mxu0 %v84
  %172 = vmatpush.msra.mxu0 %v83
  %173 = vmatpush.msra.mxu0 %v82
  %174 = vmatpush.msra.mxu0 %v81
  %175 = vmatpush.msra.mxu0 %v80
  %176 = vmatmul.f32.gmra.mxu0 %v31
  %v177 = vpop.f32.mrf.mxu0
  %v178 = vadd.f32 %v158, %v177
  %179 = vdwg.mxu0
  %v180 = vmax.f32 %v178, 0.0
  %v181 = vld [vmem:[%s3] sm:$0xff]
  %v182 = vld [vmem:[%s3 + $0x8] sm:$0xff]
  %v183 = vld [vmem:[%s3 + $0x10] sm:$0xff]
  %v184 = vld [vmem:[%s3 + $0x18] sm:$0xff]
  %v185 = vld [vmem:[%s3 + $0x20] sm:$0xff]
  %v186 = vld [vmem:[%s3 + $0x28] sm:$0xff]
  %v187 = vld [vmem:[%s3 + $0x30] sm:$0xff]
  %v188 = vld [vmem:[%s3 + $0x38] sm:$0xff]
  %v189 = vld [vmem:[%s4] sm:$0x1]
  %v191 = vperm.slane %v189, 0
  %vm193 = vcmask 523264
  %v195 = vsel %vm193, %v180, 0
  %197 = vmatpush.msra.mxu0 0.0
  %198 = vmatpush.msra.mxu0 0.0
  %199 = vmatpush.msra.mxu0 0.0
  %200 = vmatpush.msra.mxu0 0.0
  %201 = vmatpush.msra.mxu0 0.0
  %202 = vmatpush.msra.mxu0 0.0
  %203 = vmatpush.msra.mxu0 0.0
  %204 = vmatpush.msra.mxu0 0.0
  %205 = vmatpush.msra.mxu0 %v188
  %206 = vmatpush.msra.mxu0 %v187
  %207 = vmatpush.msra.mxu0 %v186
  %208 = vmatpush.msra.mxu0 %v185
  %209 = vmatpush.msra.mxu0 %v184
  %210 = vmatpush.msra.mxu0 %v183
  %211 = vmatpush.msra.mxu0 %v182
  %212 = vmatpush.msra.mxu0 %v181
  %213 = vmatmul.f32.gmra.mxu0 %v195
  %v214 = vpop.f32.mrf.mxu0
  %v215 = vadd.f32 %v191, %v214
  %216 = vdwg.mxu0
  %v217 = vmax.f32 %v215, 0.0
  %v218 = vld [vmem:[%s5] sm:$0x1]
  %v220 = vperm.slane %v218, 0
  %v222 = vmul.f32 %v217, %v220
  %223 = vadd.xlane.f32.xlu0 %v222
  %v224 = vpop.xlane.xlu0 %223
  %v225 = vld [vmem:[#allocation2] sm:$0x1]
  %v227 = vperm.slane %v225, 0
  %v229 = vadd.f32 %v224, %v227
  %vm230 = vcmask 7168
  %231 = vst.msk [vmem:[%s7] sm:$0xff] %vm230, %v229
  // Predicated region
  $region30: #{tpu_custom_call.1} parent=0 // pred_check
    _
  $region31: #{tpu_custom_call.1} parent=0 // pred_check_branch
    %233 = sbr.rel (0) target = $region33
  $region32: #{tpu_custom_call.1} parent=0 // pred_region
    _
  $region33: #{tpu_custom_call.1} parent=0 // pred_fallthru
    _
  // Predicated region
  $region34: #{tpu_custom_call.1} parent=0 // pred_check
    _
  $region35: #{tpu_custom_call.1} parent=0 // pred_check_branch
    %235 = sbr.rel (0) target = $region37
  $region36: #{tpu_custom_call.1} parent=0 // pred_region
    _
  $region37: #{tpu_custom_call.1} parent=0 // pred_fallthru
    _

</llo_original>
